<compile_context>
chip_gen: v7x
topology: tpu7x:2x2x1
jax: 0.10.0
libtpu: 0.0.40
codegen_flags: <defaults>
</compile_context>

<pallas_src>
from functools import lru_cache

import jax
import jax.numpy as jnp
import numpy as np
from jax.experimental import pallas as pl
from jax.experimental.pallas import tpu as pltpu

_ROW_ALIGN = 16              # satisfies both f32 (8,128) and bf16 (16,128) sublane tiling
_BLOCK_BYTE_CAP = 8 << 20    # ~8 MiB per output block (16 MiB double-buffered)
_VMEM_LIMIT_BYTES = 32 << 20  # explicit; safe on v5e/v6e (128 MiB) and v7x (64 MiB)


def _pe_kernel(inv_freq_ref, parity_ref, o_ref):
    """One (ts, d_model) row-tile of the PE table.

    inv_freq_ref: (1, d_model) with inv_freq[j] = 10000^(-2*(j//2)/d_model)
    parity_ref:   (1, d_model) with 0.0 on even columns, 1.0 on odd columns
    out[p, j] = sin(p * inv_freq[j]) on even j, cos(...) on odd j
    """
    ts = o_ref.shape[0]
    base = pl.program_id(0) * ts                                   # absolute row of this tile
    # (ts, 1) position column; lane broadcast against the (1, d) rows does the rest.
    pos = (jax.lax.broadcasted_iota(jnp.int32, (ts, 1), 0) + base).astype(jnp.float32)
    angle = pos * inv_freq_ref[...]                                # (ts, d) via broadcast
    sin_a = jnp.sin(angle)
    cos_a = jnp.cos(angle)
    # Exact 0/1 blend (parity is exactly 0.0 or 1.0): picks sin on even, cos on odd.
    out = sin_a + parity_ref[...] * (cos_a - sin_a)
    o_ref[...] = out.astype(o_ref.dtype)


def _round_up(n: int, m: int) -> int:
    return ((n + m - 1) // m) * m


@lru_cache(maxsize=None)
def _pe_table(seq_len: int, d_model: int, dtype=jnp.float32) -> jax.Array:
    """Build the (seq_len, d_model) PE table with a single Pallas launch.

    Cached per (seq_len, d_model, dtype). Note: the cached value is a device
    array pinned to the default device at first call.
    """
    assert d_model % 2 == 0, "d_model must be even (matches the PyTorch module)"

    # ---- Row-tile size -----------------------------------------------------
    if seq_len <= _ROW_ALIGN:
        ts = seq_len                                # block dim == full array dim -> legal
    else:
        itemsize = jnp.dtype(dtype).itemsize
        bytes_per_row = max(1, d_model * itemsize)
        ts_cap = max(_ROW_ALIGN,
                     (_BLOCK_BYTE_CAP // bytes_per_row) // _ROW_ALIGN * _ROW_ALIGN)
        # Aim for >= 2 roughly even tiles so v7x's two TensorCores both get work.
        ts_half = _round_up(pl.cdiv(seq_len, 2), _ROW_ALIGN)
        ts = min(ts_cap, ts_half)
    grid = (pl.cdiv(seq_len, ts),)

    # ---- Column-only rows, hoisted to the host -----------------------------
    col = np.arange(d_model)
    half = (col // 2).astype(np.float64)
    inv_freq = np.power(10000.0, -2.0 * half / float(d_model)).astype(np.float32)
    parity = (col % 2).astype(np.float32)
    inv_freq = jnp.asarray(inv_freq.reshape(1, d_model))
    parity = jnp.asarray(parity.reshape(1, d_model))

    pe = pl.pallas_call(
        _pe_kernel,
        out_shape=jax.ShapeDtypeStruct((seq_len, d_model), dtype),
        grid=grid,
        in_specs=[
            # Tiny (1, d_model) rows: fetch whole into VMEM once, no per-step tiling.
            pl.BlockSpec(memory_space=pltpu.MemorySpace.VMEM),
            pl.BlockSpec(memory_space=pltpu.MemorySpace.VMEM),
        ],
        # Last block dim equals the full array dim; partial last row-tile is masked.
        out_specs=pl.BlockSpec((ts, d_model), lambda i: (i, 0)),
        compiler_params=pltpu.CompilerParams(
            dimension_semantics=("parallel",),
            vmem_limit_bytes=_VMEM_LIMIT_BYTES,
        ),
    )(inv_freq, parity)
    return pe


def positional_encoding(x: jax.Array, dim: int = 1, max_len: int = 1000,
                        dtype=jnp.float32) -> jax.Array:
    """JAX/Pallas equivalent of PositionalEncoding.forward(x, dim).

    Pass dtype=jnp.bfloat16 to emit the table in the consumer dtype and halve
    HBM store traffic; default float32 matches the PyTorch buffer.
    """
    if dim not in (0, 1):
        raise ValueError("dim must be 0 or 1")
    seq_len = x.shape[dim]
    if seq_len > max_len:
        raise ValueError(f"x.shape[{dim}]={seq_len} exceeds max_len={max_len}")
    d_model = x.shape[-1]

    pe = _pe_table(int(seq_len), int(d_model), dtype)
    if dim == 0:
        return pe[:, None, :]   # (seq, 1, d_model)
    return pe[None, :, :]       # (1, seq, d_model)


def _reference_pe(seq_len: int, d_model: int) -> np.ndarray:
    pe = np.zeros((seq_len, d_model), dtype=np.float32)
    pos = np.arange(seq_len, dtype=np.float32).reshape(-1, 1)
    div = np.power(10000.0, np.arange(0, d_model, 2, dtype=np.float32) / d_model)
    ang = pos / div
    pe[:, 0::2] = np.sin(ang)
    pe[:, 1::2] = np.cos(ang)
    return pe


if __name__ == "__main__":
    key = jax.random.PRNGKey(0)
    # x: (num=2, num_tokens=8, d_model=32)
    x = jax.random.normal(key, (2, 8, 32), dtype=jnp.float32)

    out1 = positional_encoding(x, dim=1)
    out0 = positional_encoding(x, dim=0)
    jax.block_until_ready(out1)
    jax.block_until_ready(out0)

    ref_seq = _reference_pe(x.shape[1], x.shape[-1])   # dim=1 -> seq axis 1
    ref_num = _reference_pe(x.shape[0], x.shape[-1])   # dim=0 -> seq axis 0

    assert out1.shape == (1, x.shape[1], x.shape[-1])
    assert out0.shape == (x.shape[0], 1, x.shape[-1])
    np.testing.assert_allclose(np.asarray(out1)[0], ref_seq, rtol=1e-5, atol=1e-5)
    np.testing.assert_allclose(np.asarray(out0)[:, 0, :], ref_num, rtol=1e-5, atol=1e-5)

    print("KERNEL_OK")
</pallas_src>

<mosaic_0001>
module attributes {stable_mosaic.version = 11 : i64} {
  func.func @_pe_kernel(%arg0: i32, %arg1: memref<1x32xf32, #tpu.memory_space<vmem>>, %arg2: memref<1x32xf32, #tpu.memory_space<vmem>>, %arg3: memref<8x32xf32, #tpu.memory_space<vmem>>) attributes {dimension_semantics = [#tpu.dimension_semantics<parallel>], iteration_bounds = array<i64: 1>, scalar_prefetch = 0 : i64, scratch_operands = 0 : i64, tpu.core_type = #tpu.core_type<tc>, window_params = [{pipeline_mode = #tpu.pipeline_mode<synchronous>, transform_indices = @transform_0, window_bounds = array<i64: 1, 32>}, {pipeline_mode = #tpu.pipeline_mode<synchronous>, transform_indices = @transform_1, window_bounds = array<i64: 1, 32>}, {transform_indices = @transform_2, window_bounds = array<i64: 8, 32>}]} {
    %c8_i32 = arith.constant 8 : i32
    %0 = arith.muli %arg0, %c8_i32 : i32
    %1 = tpu.iota {dimensions = array<i32: 0>} : vector<8x1xi32>
    %2 = vector.broadcast %0 : i32 to vector<8x1xi32>
    %3 = arith.addi %1, %2 : vector<8x1xi32>
    %4 = arith.sitofp %3 : vector<8x1xi32> to vector<8x1xf32>
    %c0 = arith.constant 0 : index
    %c0_0 = arith.constant 0 : index
    %5 = vector.load %arg1[%c0, %c0_0] : memref<1x32xf32, #tpu.memory_space<vmem>>, vector<1x32xf32>
    %6 = vector.broadcast %4 : vector<8x1xf32> to vector<8x32xf32>
    %7 = vector.broadcast %5 : vector<1x32xf32> to vector<8x32xf32>
    %8 = arith.mulf %6, %7 : vector<8x32xf32>
    %9 = math.sin %8 : vector<8x32xf32>
    %10 = math.cos %8 : vector<8x32xf32>
    %c0_1 = arith.constant 0 : index
    %c0_2 = arith.constant 0 : index
    %11 = vector.load %arg2[%c0_1, %c0_2] : memref<1x32xf32, #tpu.memory_space<vmem>>, vector<1x32xf32>
    %12 = arith.subf %10, %9 : vector<8x32xf32>
    %13 = vector.broadcast %11 : vector<1x32xf32> to vector<8x32xf32>
    %14 = arith.mulf %13, %12 : vector<8x32xf32>
    %15 = arith.addf %9, %14 : vector<8x32xf32>
    %c0_3 = arith.constant 0 : index
    %c0_4 = arith.constant 0 : index
    %16 = vector.load %arg3[%c0_3, %c0_4] : memref<8x32xf32, #tpu.memory_space<vmem>>, vector<8x32xf32>
    tpu.vector_store %arg3[%c0_3, %c0_4], %15 {strides = array<i32>} : memref<8x32xf32, #tpu.memory_space<vmem>>, vector<8x32xf32>,
    return
  }
  func.func @transform_0(%arg0: i32) -> (i32, i32) {
    %c0_i32 = arith.constant 0 : i32
    %c0_i32_0 = arith.constant 0 : i32
    %c0_i32_1 = arith.constant 0 : i32
    return %c0_i32, %c0_i32_0 : i32, i32
  }
  func.func @transform_1(%arg0: i32) -> (i32, i32) {
    %c0_i32 = arith.constant 0 : i32
    %c0_i32_0 = arith.constant 0 : i32
    %c0_i32_1 = arith.constant 0 : i32
    return %c0_i32, %c0_i32_0 : i32, i32
  }
  func.func @transform_2(%arg0: i32) -> (i32, i32) {
    %c0_i32 = arith.constant 0 : i32
    %c0_i32_0 = arith.constant 0 : i32
    return %arg0, %c0_i32 : i32, i32
  }
}

</mosaic_0001>

<llo_original>
// kernel: tpu_custom_call.1
$region0: #{tpu_custom_call.1}
  #allocation0 [shape = 'u32[]', space=smem, size = 0x4, offset = 0x4, fixed_abs, tag = 'smem constant byte address 0x4 - core index']
  #allocation1 [shape = 'u32[144,128]{1,0:T(1,128)}', space=vmem, size = 0x12000, scoped, tag = 'internal scratch']
  %s0 = inlined_call_operand.hbm [shape: f32[1,32], index: 0, kind: input, shape index: {}]
  %s1 = inlined_call_operand.vmem [shape: f32[1,32], index: 1, kind: input, shape index: {}]
  %s2 = inlined_call_operand.hbm [shape: f32[8,32], index: 2, kind: output, shape index: {}]
  %s3 = sld [smem:[#allocation0]]
  $region22: #{tpu_custom_call.1} parent=0
    _
  %s5 = ssub.s32 1, %s3
  %s6 = scalar_select 0, %s5, %s3
  $region1: #{tpu_custom_call.1} parent=0
    #allocation2 [shape = 'u8[512]{0}', space=vmem, size = 0x400, scoped, tag = 'input window, operand 0, single buffered']
    #allocation3 [shape = 's32[1]{0}', space=sflag, size = 0x4, scoped, tag = 'scoped memory for tpu_custom_call.1']
    #allocation4 [shape = 's32[1]{0}', space=sflag, size = 0x4, scoped, tag = 'scoped memory for tpu_custom_call.1']
    #allocation5 [shape = 'u8[4096]{0}', space=vmem, size = 0x1000, scoped, tag = 'output window, operand 0, single buffered']
    %7 = vsyncpa [#allocation3], 0
    %8 = vsyncpa [#allocation4], 0
    // Predicated region
    $region2: #{tpu_custom_call.1} parent=1 // pred_check
      _
    $region3: #{tpu_custom_call.1} parent=1 // pred_check_branch
      %10 = sbr.rel (0) target = $region5
    $region4: #{tpu_custom_call.1} parent=1 // pred_region
      %s12 = ssub.s32 16, 16
      %13 = vsyncadd [#allocation3], %s12
      %s15 = sshll.u32 [#allocation2], 4
      %s16 = int_to_ptr.vmem [resolvable:$true] %s15
      %18 = dma.hbm_to_vmem [thread:$0]  %s0, 16, %s16, [#allocation3]
    $region5: #{tpu_custom_call.1} parent=1 // pred_fallthru
      _
    // Predicated region
    $region6: #{tpu_custom_call.1} parent=1 // pred_check
      _
    $region7: #{tpu_custom_call.1} parent=1 // pred_check_branch
      %20 = sbr.rel (0) target = $region9
    $region8: #{tpu_custom_call.1} parent=1 // pred_region
      _
    $region9: #{tpu_custom_call.1} parent=1 // pred_fallthru
      _
    // Predicated region
    $region10: #{tpu_custom_call.1} parent=1 // pred_check
      _
    $region11: #{tpu_custom_call.1} parent=1 // pred_check_branch
      %22 = sbr.rel (0) target = $region13
    $region12: #{tpu_custom_call.1} parent=1 // pred_region
      %23 = dma.done [#allocation3], 16
    $region13: #{tpu_custom_call.1} parent=1 // pred_fallthru
      _
    %s24 = smul.u32 0, 8
    %v25 = vlaneseq
    %v26 = vshrl.u32 %v25, 7
    %v27 = vstv %s24
    %v28 = vadd.s32 %v26, %v27
    %v29 = vcvt.s32.f32 %v28
    %v30 = vld [vmem:[#allocation2] sm:$0x1]
    %v32 = vlaneseq
    %v33 = vshrl.u32 %v32, 7
    %v34 = vsub.s32 0, %v33
    %v35 = vrot.slane %v30, %v34
    %v37 = vmul.f32 %v29, %v35
    %v38 = vand.u32 2147483647, %v37
    %vm39 = vcmp.le.f32.partialorder %v38, 0.7853982
    %vm40 = vcmp.lt.s32.totalorder %v37, 0
    %v41 = vand.u32 %v37, 2139095040
    %v42 = vshrl.u32 %v41, 23
    %v43 = vsub.s32 %v42, 127
    %v44 = vand.u32 2147483647, %v37
    %v45 = vand.u32 %v44, 8388607
    %v46 = vor.u32 %v45, 8388608
    %v47 = vsub.s32 0, %v46
    %v48 = vadd.s32 %v43, 1
    %vm49 = vcmp.gt.s32.totalorder %v48, 0
    %v50 = vsel %vm49, %v48, 0
    %v51 = vshrl.u32 %v50, 5
    %v52 = vand.u32 %v50, 31
    %v53 = vsub.s32 32, %v52
    %v54 = vshrl.u32 683565275, %v53
    %v55 = vshll.u32 683565275, %v52
    %v56 = vshrl.u32 2475754826, %v53
    %v57 = vor.u32 %v55, %v56
    %v58 = vshll.u32 2475754826, %v52
    %v59 = vshrl.u32 2131351028, %v53
    %v60 = vor.u32 %v58, %v59
    %v61 = vshll.u32 2131351028, %v52
    %v62 = vshrl.u32 2102212464, %v53
    %v63 = vor.u32 %v61, %v62
    %v64 = vshll.u32 2102212464, %v52
    %v65 = vshrl.u32 920167782, %v53
    %v66 = vor.u32 %v64, %v65
    %v67 = vshll.u32 920167782, %v52
    %v68 = vshrl.u32 1326507024, %v53
    %v69 = vor.u32 %v67, %v68
    %vm70 = vcmp.lt.s32.totalorder %v51, 1
    %vm71 = vcmp.lt.s32.totalorder %v51, 2
    %vm72 = vcmp.lt.s32.totalorder %v51, 3
    %vm73 = vcmp.lt.s32.totalorder %v51, 4
    %v74 = vsel %vm70, %v54, %v57
    %v75 = vsel %vm73, %v63, 2102212464
    %v76 = vsel %vm72, %v60, %v75
    %v77 = vsel %vm71, %v74, %v76
    %v78 = vsel %vm70, %v57, %v60
    %v79 = vsel %vm73, %v66, 920167782
    %v80 = vsel %vm72, %v63, %v79
    %v81 = vsel %vm71, %v78, %v80
    %v82 = vsel %vm70, %v60, %v63
    %v83 = vsel %vm73, %v69, 1326507024
    %v84 = vsel %vm72, %v66, %v83
    %v85 = vsel %vm71, %v82, %v84
    %v86 = vshll.u32 %v46, 8
    %v87 = vmul.u32.u64.compose %v86, %v85
    %v88 = vextract.low.u32 %v87
    %v89 = vextract.high.u32 %v87
    %v90 = vmul.u32.u64.compose %v86, %v81
    %v91 = vextract.low.u32 %v90
    %v92 = vextract.high.u32 %v90
    %v93 = vmul.u32 %v86, %v77
    %v94 = vadd.s32 %v89, %v91
    %vm95 = vc.u32 %v89, %v91
    %v96 = vadd.s32 %v92, 1
    %v97 = vsel %vm95, %v96, %v92
    %v98 = vadd.s32 %v93, %v97
    %v99 = vadd.s32 %v98, 536870912
    %v100 = vshrl.u32 %v99, 30
    %v101 = vshll.u32 %v100, 30
    %v102 = vsub.s32 %v98, %v101
    %vm103 = vcmp.lt.s32.totalorder %v102, 0
    %v104 = vsub.s32 0, %v102
    %v105 = vsel %vm103, %v104, %v102
    %v106 = vclz %v105
    %v107 = vsub.s32 %v106, 2
    %vm108 = vcmp.gt.s32.totalorder 0, %v107
    %v109 = vsel %vm108, 0, %v107
    %v110 = vsub.s32 32, %v109
    %v111 = vshll.u32 %v102, %v109
    %v112 = vshrl.u32 %v94, %v110
    %v113 = vor.u32 %v111, %v112
    %v114 = vsub.s32 4294967266, %v109
    %v115 = vadd.s32 %v114, 127
    %v116 = vshll.u32 %v115, 23
    %v117 = vor.u32 4788187, %v116
    %v118 = vand.u32 2147483647, %v117
    %v120 = vcvt.s32.f32 %v113
    %v121 = vmul.f32 %v120, %v118
    %v122 = vxor.u32 %v121, 2147483648
    %v123 = vsel %vm40, %v122, %v121
    %v124 = vsub.s32 4, %v100
    %v125 = vsel %vm40, %v124, %v100
    %v126 = vsel %vm39, %v37, %v123
    %v127 = vsel %vm39, 0, %v125
    %v128 = vcosq.f32.pop %v126
    %v129 = vsinq.f32.pop %v126
    %vm130 = vweird.f32 %v37
    %v131 = vadd.s32 %v127, 3
    %v132 = vand.u32 %v131, 3
    %vm133 = vcmp.lt.s32.totalorder %v132, 2
    %vm134 = vcmp.eq.s32.totalorder %v132, 0
    %v135 = vxor.u32 %v129, 2147483648
    %v136 = vsel %vm134, %v128, %v135
    %vm137 = vcmp.eq.s32.totalorder %v132, 2
    %v138 = vxor.u32 %v128, 2147483648
    %v139 = vsel %vm137, %v138, %v129
    %v140 = vsel %vm133, %v136, %v139
    %v141 = vsel %vm130, nan, %v140
    %v142 = vand.u32 2147483647, %v37
    %vm143 = vcmp.le.f32.partialorder %v142, 0.7853982
    %vm144 = vcmp.lt.s32.totalorder %v37, 0
    %v145 = vand.u32 %v37, 2139095040
    %v146 = vshrl.u32 %v145, 23
    %v147 = vsub.s32 %v146, 127
    %v148 = vand.u32 2147483647, %v37
    %v149 = vand.u32 %v148, 8388607
    %v150 = vor.u32 %v149, 8388608
    %v151 = vsub.s32 0, %v150
    %v152 = vadd.s32 %v147, 1
    %vm153 = vcmp.gt.s32.totalorder %v152, 0
    %v154 = vsel %vm153, %v152, 0
    %v155 = vshrl.u32 %v154, 5
    %v156 = vand.u32 %v154, 31
    %v157 = vsub.s32 32, %v156
    %v158 = vshrl.u32 683565275, %v157
    %v159 = vshll.u32 683565275, %v156
    %v160 = vshrl.u32 2475754826, %v157
    %v161 = vor.u32 %v159, %v160
    %v162 = vshll.u32 2475754826, %v156
    %v163 = vshrl.u32 2131351028, %v157
    %v164 = vor.u32 %v162, %v163
    %v165 = vshll.u32 2131351028, %v156
    %v166 = vshrl.u32 2102212464, %v157
    %v167 = vor.u32 %v165, %v166
    %v168 = vshll.u32 2102212464, %v156
    %v169 = vshrl.u32 920167782, %v157
    %v170 = vor.u32 %v168, %v169
    %v171 = vshll.u32 920167782, %v156
    %v172 = vshrl.u32 1326507024, %v157
    %v173 = vor.u32 %v171, %v172
    %vm174 = vcmp.lt.s32.totalorder %v155, 1
    %vm175 = vcmp.lt.s32.totalorder %v155, 2
    %vm176 = vcmp.lt.s32.totalorder %v155, 3
    %vm177 = vcmp.lt.s32.totalorder %v155, 4
    %v178 = vsel %vm174, %v158, %v161
    %v179 = vsel %vm177, %v167, 2102212464
    %v180 = vsel %vm176, %v164, %v179
    %v181 = vsel %vm175, %v178, %v180
    %v182 = vsel %vm174, %v161, %v164
    %v183 = vsel %vm177, %v170, 920167782
    %v184 = vsel %vm176, %v167, %v183
    %v185 = vsel %vm175, %v182, %v184
    %v186 = vsel %vm174, %v164, %v167
    %v187 = vsel %vm177, %v173, 1326507024
    %v188 = vsel %vm176, %v170, %v187
    %v189 = vsel %vm175, %v186, %v188
    %v190 = vshll.u32 %v150, 8
    %v191 = vmul.u32.u64.compose %v190, %v189
    %v192 = vextract.low.u32 %v191
    %v193 = vextract.high.u32 %v191
    %v194 = vmul.u32.u64.compose %v190, %v185
    %v195 = vextract.low.u32 %v194
    %v196 = vextract.high.u32 %v194
    %v197 = vmul.u32 %v190, %v181
    %v198 = vadd.s32 %v193, %v195
    %vm199 = vc.u32 %v193, %v195
    %v200 = vadd.s32 %v196, 1
    %v201 = vsel %vm199, %v200, %v196
    %v202 = vadd.s32 %v197, %v201
    %v203 = vadd.s32 %v202, 536870912
    %v204 = vshrl.u32 %v203, 30
    %v205 = vshll.u32 %v204, 30
    %v206 = vsub.s32 %v202, %v205
    %vm207 = vcmp.lt.s32.totalorder %v206, 0
    %v208 = vsub.s32 0, %v206
    %v209 = vsel %vm207, %v208, %v206
    %v210 = vclz %v209
    %v211 = vsub.s32 %v210, 2
    %vm212 = vcmp.gt.s32.totalorder 0, %v211
    %v213 = vsel %vm212, 0, %v211
    %v214 = vsub.s32 32, %v213
    %v215 = vshll.u32 %v206, %v213
    %v216 = vshrl.u32 %v198, %v214
    %v217 = vor.u32 %v215, %v216
    %v218 = vsub.s32 4294967266, %v213
    %v219 = vadd.s32 %v218, 127
    %v220 = vshll.u32 %v219, 23
    %v221 = vor.u32 4788187, %v220
    %v222 = vand.u32 2147483647, %v221
    %v224 = vcvt.s32.f32 %v217
    %v225 = vmul.f32 %v224, %v222
    %v226 = vxor.u32 %v225, 2147483648
    %v227 = vsel %vm144, %v226, %v225
    %v228 = vsub.s32 4, %v204
    %v229 = vsel %vm144, %v228, %v204
    %v230 = vsel %vm143, %v37, %v227
    %v231 = vsel %vm143, 0, %v229
    %v232 = vcosq.f32.pop %v230
    %v233 = vsinq.f32.pop %v230
    %vm234 = vweird.f32 %v37
    %v235 = vand.u32 %v231, 3
    %vm236 = vcmp.lt.s32.totalorder %v235, 2
    %vm237 = vcmp.eq.s32.totalorder %v235, 0
    %v238 = vxor.u32 %v233, 2147483648
    %v239 = vsel %vm237, %v232, %v238
    %vm240 = vcmp.eq.s32.totalorder %v235, 2
    %v241 = vxor.u32 %v232, 2147483648
    %v242 = vsel %vm240, %v241, %v233
    %v243 = vsel %vm236, %v239, %v242
    %v244 = vsel %vm234, nan, %v243
    %v245 = vld [vmem:[%s1] sm:$0x1]
    %v246 = vsub.f32 %v244, %v141
    %v248 = vlaneseq
    %v249 = vshrl.u32 %v248, 7
    %v250 = vsub.s32 0, %v249
    %v251 = vrot.slane %v245, %v250
    %v253 = vmul.f32 %v251, %v246
    %v254 = vadd.f32 %v141, %v253
    %vm255 = vcmask 261120
    %256 = vst.msk [vmem:[#allocation5] sm:$0xff] %vm255, %v254
    // Predicated region
    $region14: #{tpu_custom_call.1} parent=1 // pred_check
      _
    $region15: #{tpu_custom_call.1} parent=1 // pred_check_branch
      %258 = sbr.rel (0) target = $region17
    $region16: #{tpu_custom_call.1} parent=1 // pred_region
      %s260 = ssub.s32 128, 128
      %261 = vsyncadd [#allocation4], %s260
      %s263 = sshll.u32 [#allocation5], 4
      %s264 = int_to_ptr.vmem [resolvable:$true] %s263
      %266 = dma.vmem_to_hbm [thread:$0]  %s264, 128, %s2, [#allocation4]
    $region17: #{tpu_custom_call.1} parent=1 // pred_fallthru
      _
    // Predicated region
    $region18: #{tpu_custom_call.1} parent=1 // pred_check
      _
    $region19: #{tpu_custom_call.1} parent=1 // pred_check_branch
      %268 = sbr.rel (0) target = $region21
    $region20: #{tpu_custom_call.1} parent=1 // pred_region
      %269 = dma.done [#allocation4], 128
    $region21: #{tpu_custom_call.1} parent=1 // pred_fallthru
      _
    %270 = vsyncpa [#allocation3], 1
    %271 = vsyncpa [#allocation4], 1

</llo_original>
